<compile_context>
chip_gen: v7x
topology: tpu7x:2x2x1
jax: 0.10.0
libtpu: 0.0.40
codegen_flags: <defaults>
</compile_context>

<pallas_src>
import functools

import jax
import jax.numpy as jnp
from jax.experimental import pallas as pl
from jax.experimental.pallas import tpu as pltpu


def _round_up(x, m):
    return -(-x // m) * m


def _span_kernel(x_ref,            # [tm, H]    hidden rows (native dtype, e.g. f32)
                 wbig_ref,         # [H, H+C]   [fc_end hidden part | clf_start] (bf16)
                 bs_ref,           # [1, C]     clf_start bias (f32)
                 wec_ref,          # [C, H]     fc_end weight, label-prob part (bf16)
                 be_ref,           # [1, H]     fc_end bias (f32)
                 g_ref,            # [1, H]     LayerNorm gamma (f32)
                 b_ref,            # [1, H]     LayerNorm beta (f32)
                 wce_ref,          # [H, C]     clf_end weight (bf16)
                 bce_ref,          # [1, C]     clf_end bias (f32)
                 out_ref,          # [tm, 2C]   out: [start logits | end logits]
                 *, hidden_size, num_classes, matmul_dtype):
    H, C = hidden_size, num_classes

    # Cast to matmul dtype inside the kernel (cheap VPU op hidden under MXU)
    # instead of a separate full-HBM-pass cast in the wrapper.
    x = x_ref[...].astype(matmul_dtype)

    # One fused MXU pass over x:
    #   columns [:H] -> fc_end hidden contribution, columns [H:] -> start logits.
    y = jnp.dot(x, wbig_ref[...], preferred_element_type=jnp.float32)
    s = y[:, H:] + bs_ref[...]                                   # [tm, C]

    # ---- softmax over classes (numerically stable, f32) ---------------------
    m = jnp.max(s, axis=-1, keepdims=True)
    e = jnp.exp(s - m)
    p = e * pl.reciprocal(jnp.sum(e, axis=-1, keepdims=True), approx=True)

    # ---- fc_end on cat([hidden, label_prob]) --------------------------------
    h = (y[:, :H]
         + jnp.dot(p.astype(matmul_dtype), wec_ref[...],
                   preferred_element_type=jnp.float32)
         + be_ref[...])

    # ---- tanh -> LayerNorm (f32; required on v5e) ----------------------------
    # TODO(synk): optional v6e/v7x-only bf16 tanh if profiling shows EUP binding.
    t = jnp.tanh(h)
    mu = jnp.mean(t, axis=-1, keepdims=True)
    var = jnp.mean(jnp.square(t - mu), axis=-1, keepdims=True)
    ln = (t - mu) * jax.lax.rsqrt(var + 1e-5) * g_ref[...] + b_ref[...]

    # ---- clf_end --------------------------------------------------------------
    end = (jnp.dot(ln.astype(matmul_dtype), wce_ref[...],
                   preferred_element_type=jnp.float32) + bce_ref[...])

    # Merged, lane-denser output: one [tm, 2C] store instead of two [tm, C]
    # masked stores / narrow writeback DMAs per grid step.
    out_ref[...] = jnp.concatenate([s, end], axis=-1).astype(out_ref.dtype)


def span_encoder_forward(hidden_states, params, *, tm=1024,
                         matmul_dtype=jnp.bfloat16, out_dtype=None):
    """hidden_states: [B, L, H]. Returns (start_prob, end_prob), each [B, L, C]."""
    B, L, H = hidden_states.shape
    C = params["w_start"].shape[0]
    if out_dtype is None:
        out_dtype = hidden_states.dtype

    # ---- row layout: flatten to [M, H]; only a sublane (<=7 row) pad ---------
    M = B * L
    M8 = _round_up(M, 8)
    x2d = hidden_states.reshape(M, H)
    if M8 != M:
        x2d = jnp.pad(x2d, ((0, M8 - M), (0, 0)))

    # ---- parameter prep (tiny glue, plain JAX) --------------------------------
    ws_t = params["w_start"].T                                    # [H, C]
    weh_t = params["w_end"][:, :H].T                              # [H, H]
    # Fused weight: x @ wbig -> fc_end-hidden part (cols :H) + start logits (cols H:)
    wbig = jnp.concatenate([weh_t, ws_t], axis=1).astype(matmul_dtype)   # [H, H+C]
    wec_t = params["w_end"][:, H:].T.astype(matmul_dtype)         # [C, H]
    wce_t = params["w_clf_end"].T.astype(matmul_dtype)            # [H, C]
    bs = params["b_start"].reshape(1, C).astype(jnp.float32)
    be = params["b_end"].reshape(1, H).astype(jnp.float32)
    gamma = params["ln_gamma"].reshape(1, H).astype(jnp.float32)
    beta = params["ln_beta"].reshape(1, H).astype(jnp.float32)
    bce = params["b_clf_end"].reshape(1, C).astype(jnp.float32)

    # ---- tile size & VMEM budget (generation-aware) ---------------------------
    in_b = jnp.dtype(x2d.dtype).itemsize
    out_b = jnp.dtype(out_dtype).itemsize
    mm_b = jnp.dtype(matmul_dtype).itemsize
    weight_vmem = ((H * (H + C) + C * H + H * C) * mm_b            # single-buffered weights
                   + (2 * C + 3 * H) * 4)                          # f32 biases / ln params

    def vmem_estimate(tm_):
        io = 2 * tm_ * H * in_b + 2 * tm_ * 2 * C * out_b          # double-buffered x / out
        interm = (tm_ * H * mm_b                                   # bf16 copy of x
                  + tm_ * (H + C) * 4                              # fused matmul result y
                  + 5 * tm_ * H * 4)                               # h / t / ln / temporaries
        return weight_vmem + io + interm

    try:
        phys_vmem = pltpu.get_tpu_info().vmem_capacity_bytes
    except Exception:                                              # pragma: no cover
        phys_vmem = 64 << 20                                       # conservative (v7x-sized)
    cap = min(int(phys_vmem * 0.78), 100 << 20)    # ~50 MiB usable on v7x, ~100 MiB v5e/v6e

    tm = max(8, min(_round_up(tm, 8), M8))         # never bigger than the padded row count
    while tm > 256 and vmem_estimate(tm) > cap:    # auto-shrink: large default tiles still
        tm = max(256, _round_up(tm // 2, 8))       # compile on v7x's 64 MiB VMEM
    vmem_limit = int(min(max(vmem_estimate(tm) + (4 << 20), 32 << 20), cap))

    grid = pl.cdiv(M8, tm)

    # Grid-invariant operands: single-buffered so the saved VMEM goes to rows.
    const = lambda shape: pl.BlockSpec(shape, lambda i: (0, 0),
                                       pipeline_mode=pl.Buffered(1))

    grid_spec = pltpu.PrefetchScalarGridSpec(
        num_scalar_prefetch=0,
        grid=(grid,),
        in_specs=[
            pl.BlockSpec((tm, H), lambda i: (i, 0)),   # hidden rows (double-buffered)
            const((H, H + C)), const((1, C)),          # fused [fc_end-hidden | clf_start] + bias
            const((C, H)), const((1, H)),              # fc_end label-prob part + bias
            const((1, H)), const((1, H)),              # LayerNorm gamma / beta
            const((H, C)), const((1, C)),              # clf_end
        ],
        out_specs=pl.BlockSpec((tm, 2 * C), lambda i: (i, 0)),
    )

    kernel = functools.partial(_span_kernel, hidden_size=H, num_classes=C,
                               matmul_dtype=matmul_dtype)

    out2d = pl.pallas_call(
        kernel,
        out_shape=jax.ShapeDtypeStruct((M8, 2 * C), out_dtype),
        grid_spec=grid_spec,
        compiler_params=pltpu.CompilerParams(
            dimension_semantics=("parallel",),
            vmem_limit_bytes=vmem_limit),
    )(x2d, wbig, bs, wec_t, be, gamma, beta, wce_t, bce)

    start = out2d[:M, :C].reshape(B, L, C)
    end = out2d[:M, C:].reshape(B, L, C)
    return start, end


def init_params(key, hidden_size, num_classes):
    """Deterministic synthetic parameters matching the nn.Module __init__ shapes."""
    H, C = hidden_size, num_classes
    ks = jax.random.split(key, 6)
    scale = 0.05
    return {
        "w_start":   scale * jax.random.normal(ks[0], (C, H), jnp.float32),
        "b_start":   scale * jax.random.normal(ks[1], (C,), jnp.float32),
        "w_end":     scale * jax.random.normal(ks[2], (H, H + C), jnp.float32),
        "b_end":     scale * jax.random.normal(ks[3], (H,), jnp.float32),
        "ln_gamma":  jnp.ones((H,), jnp.float32),
        "ln_beta":   jnp.zeros((H,), jnp.float32),
        "w_clf_end": scale * jax.random.normal(ks[4], (C, H), jnp.float32),
        "b_clf_end": scale * jax.random.normal(ks[5], (C,), jnp.float32),
    }


def _reference_forward(x, params):
    """Pure-JAX f32 reference of the PyTorch forward (soft_label=True)."""
    s = x @ params["w_start"].T + params["b_start"]
    p = jax.nn.softmax(s, axis=-1)
    inp = jnp.concatenate([x, p], axis=-1)
    h = inp @ params["w_end"].T + params["b_end"]
    t = jnp.tanh(h)
    mu = jnp.mean(t, -1, keepdims=True)
    var = jnp.mean(jnp.square(t - mu), -1, keepdims=True)
    ln = (t - mu) / jnp.sqrt(var + 1e-5) * params["ln_gamma"] + params["ln_beta"]
    e = ln @ params["w_clf_end"].T + params["b_clf_end"]
    return s, e


if __name__ == "__main__":
    key = jax.random.PRNGKey(0)
    kx, kp, kx2, kp2 = jax.random.split(key, 4)

    # --- config 1: small shapes consistent with the module (B=2, L=8, H=32, C=5)
    B, L, H, C = 2, 8, 32, 5
    hidden_states = jax.random.normal(kx, (B, L, H), jnp.float32)
    params = init_params(kp, H, C)

    fwd = jax.jit(span_encoder_forward)
    start_prob, end_prob = fwd(hidden_states, params)
    jax.block_until_ready((start_prob, end_prob))

    ref_start, ref_end = _reference_forward(hidden_states, params)
    assert start_prob.shape == (B, L, C) and end_prob.shape == (B, L, C)
    # bf16 matmul operands + approx reciprocal -> bf16-level tolerance.
    assert jnp.allclose(start_prob, ref_start, atol=2e-2, rtol=2e-2)
    assert jnp.allclose(end_prob, ref_end, atol=2e-2, rtol=2e-2)

    # --- config 2: multi-step grid (B=4, L=64, H=128, C=5; tm=64 -> grid of 4)
    B2, L2, H2, C2 = 4, 64, 128, 5
    hidden2 = jax.random.normal(kx2, (B2, L2, H2), jnp.float32)
    params2 = init_params(kp2, H2, C2)
    fwd2 = jax.jit(functools.partial(span_encoder_forward, tm=64))
    s2, e2 = fwd2(hidden2, params2)
    jax.block_until_ready((s2, e2))
    r_s2, r_e2 = _reference_forward(hidden2, params2)
    assert s2.shape == (B2, L2, C2) and e2.shape == (B2, L2, C2)
    assert jnp.allclose(s2, r_s2, atol=2e-2, rtol=2e-2)
    assert jnp.allclose(e2, r_e2, atol=2e-2, rtol=2e-2)

    print("KERNEL_OK")
</pallas_src>

<mosaic_0001>
module attributes {stable_mosaic.version = 11 : i64} {
  func.func @_span_kernel(%arg0: i32, %arg1: memref<16x32xf32, #tpu.memory_space<vmem>>, %arg2: memref<32x37xbf16, #tpu.memory_space<vmem>>, %arg3: memref<1x5xf32, #tpu.memory_space<vmem>>, %arg4: memref<5x32xbf16, #tpu.memory_space<vmem>>, %arg5: memref<1x32xf32, #tpu.memory_space<vmem>>, %arg6: memref<1x32xf32, #tpu.memory_space<vmem>>, %arg7: memref<1x32xf32, #tpu.memory_space<vmem>>, %arg8: memref<32x5xbf16, #tpu.memory_space<vmem>>, %arg9: memref<1x5xf32, #tpu.memory_space<vmem>>, %arg10: memref<16x10xf32, #tpu.memory_space<vmem>>) attributes {dimension_semantics = [#tpu.dimension_semantics<parallel>], iteration_bounds = array<i64: 1>, scalar_prefetch = 0 : i64, scratch_operands = 0 : i64, tpu.core_type = #tpu.core_type<tc>, window_params = [{transform_indices = @transform_0, window_bounds = array<i64: 16, 32>}, {pipeline_mode = #tpu.pipeline_mode<synchronous>, transform_indices = @transform_1, window_bounds = array<i64: 32, 37>}, {pipeline_mode = #tpu.pipeline_mode<synchronous>, transform_indices = @transform_2, window_bounds = array<i64: 1, 5>}, {pipeline_mode = #tpu.pipeline_mode<synchronous>, transform_indices = @transform_3, window_bounds = array<i64: 5, 32>}, {pipeline_mode = #tpu.pipeline_mode<synchronous>, transform_indices = @transform_4, window_bounds = array<i64: 1, 32>}, {pipeline_mode = #tpu.pipeline_mode<synchronous>, transform_indices = @transform_5, window_bounds = array<i64: 1, 32>}, {pipeline_mode = #tpu.pipeline_mode<synchronous>, transform_indices = @transform_6, window_bounds = array<i64: 1, 32>}, {pipeline_mode = #tpu.pipeline_mode<synchronous>, transform_indices = @transform_7, window_bounds = array<i64: 32, 5>}, {pipeline_mode = #tpu.pipeline_mode<synchronous>, transform_indices = @transform_8, window_bounds = array<i64: 1, 5>}, {transform_indices = @transform_9, window_bounds = array<i64: 16, 10>}]} {
    %c0 = arith.constant 0 : index
    %c0_0 = arith.constant 0 : index
    %0 = vector.load %arg1[%c0, %c0_0] : memref<16x32xf32, #tpu.memory_space<vmem>>, vector<16x32xf32>
    %1 = arith.truncf %0 : vector<16x32xf32> to vector<16x32xbf16>
    %c0_1 = arith.constant 0 : index
    %c0_2 = arith.constant 0 : index
    %2 = vector.load %arg2[%c0_1, %c0_2] : memref<32x37xbf16, #tpu.memory_space<vmem>>, vector<32x37xbf16>
    %cst = arith.constant dense<0.000000e+00> : vector<16x37xf32>
    %3 = tpu.matmul %1, %2, %cst {dimension_numbers = #tpu.dot_dimension_numbers<[1], [0], [0], [1], [0, 0, 1, 1], [], []>} : vector<16x32xbf16>, vector<32x37xbf16>, vector<16x37xf32> -> vector<16x37xf32>
    %4 = vector.extract_strided_slice %3 {offsets = [0, 32], sizes = [16, 5], strides = [1, 1]} : vector<16x37xf32> to vector<16x5xf32>
    %c0_3 = arith.constant 0 : index
    %c0_4 = arith.constant 0 : index
    %5 = vector.load %arg3[%c0_3, %c0_4] : memref<1x5xf32, #tpu.memory_space<vmem>>, vector<1x5xf32>
    %6 = vector.broadcast %5 : vector<1x5xf32> to vector<16x5xf32>
    %7 = arith.addf %4, %6 : vector<16x5xf32>
    %cst_5 = arith.constant dense<0xFF800000> : vector<16xf32>
    %8 = vector.multi_reduction <maximumf>, %7, %cst_5 [1] : vector<16x5xf32> to vector<16xf32>
    %9 = vector.shape_cast %8 : vector<16xf32> to vector<16x1xf32>
    %10 = vector.broadcast %9 : vector<16x1xf32> to vector<16x5xf32>
    %11 = arith.subf %7, %10 : vector<16x5xf32>
    %12 = math.exp %11 : vector<16x5xf32>
    %cst_6 = arith.constant dense<0.000000e+00> : vector<16xf32>
    %13 = vector.multi_reduction <add>, %12, %cst_6 [1] : vector<16x5xf32> to vector<16xf32>
    %14 = vector.shape_cast %13 : vector<16xf32> to vector<16x1xf32>
    %15 = tpu.reciprocal %14 {approx = true} : vector<16x1xf32> -> vector<16x1xf32>
    %16 = vector.broadcast %15 : vector<16x1xf32> to vector<16x5xf32>
    %17 = arith.mulf %12, %16 : vector<16x5xf32>
    %18 = vector.extract_strided_slice %3 {offsets = [0, 0], sizes = [16, 32], strides = [1, 1]} : vector<16x37xf32> to vector<16x32xf32>
    %19 = arith.truncf %17 : vector<16x5xf32> to vector<16x5xbf16>
    %c0_7 = arith.constant 0 : index
    %c0_8 = arith.constant 0 : index
    %20 = vector.load %arg4[%c0_7, %c0_8] : memref<5x32xbf16, #tpu.memory_space<vmem>>, vector<5x32xbf16>
    %cst_9 = arith.constant dense<0.000000e+00> : vector<16x32xf32>
    %21 = tpu.matmul %19, %20, %cst_9 {dimension_numbers = #tpu.dot_dimension_numbers<[1], [0], [0], [1], [0, 0, 1, 1], [], []>} : vector<16x5xbf16>, vector<5x32xbf16>, vector<16x32xf32> -> vector<16x32xf32>
    %22 = arith.addf %18, %21 : vector<16x32xf32>
    %c0_10 = arith.constant 0 : index
    %c0_11 = arith.constant 0 : index
    %23 = vector.load %arg5[%c0_10, %c0_11] : memref<1x32xf32, #tpu.memory_space<vmem>>, vector<1x32xf32>
    %24 = vector.broadcast %23 : vector<1x32xf32> to vector<16x32xf32>
    %25 = arith.addf %22, %24 : vector<16x32xf32>
    %26 = math.tanh %25 : vector<16x32xf32>
    %cst_12 = arith.constant dense<0.000000e+00> : vector<16xf32>
    %27 = vector.multi_reduction <add>, %26, %cst_12 [1] : vector<16x32xf32> to vector<16xf32>
    %28 = vector.shape_cast %27 : vector<16xf32> to vector<16x1xf32>
    %cst_13 = arith.constant 3.200000e+01 : f32
    %29 = vector.broadcast %cst_13 : f32 to vector<16x1xf32>
    %30 = arith.divf %28, %29 : vector<16x1xf32>
    %31 = vector.broadcast %30 : vector<16x1xf32> to vector<16x32xf32>
    %32 = arith.subf %26, %31 : vector<16x32xf32>
    %33 = arith.mulf %32, %32 : vector<16x32xf32>
    %cst_14 = arith.constant dense<0.000000e+00> : vector<16xf32>
    %34 = vector.multi_reduction <add>, %33, %cst_14 [1] : vector<16x32xf32> to vector<16xf32>
    %35 = vector.shape_cast %34 : vector<16xf32> to vector<16x1xf32>
    %cst_15 = arith.constant 3.200000e+01 : f32
    %36 = vector.broadcast %cst_15 : f32 to vector<16x1xf32>
    %37 = arith.divf %35, %36 : vector<16x1xf32>
    %38 = vector.broadcast %30 : vector<16x1xf32> to vector<16x32xf32>
    %39 = arith.subf %26, %38 : vector<16x32xf32>
    %cst_16 = arith.constant 9.99999974E-6 : f32
    %40 = vector.broadcast %cst_16 : f32 to vector<16x1xf32>
    %41 = arith.addf %37, %40 : vector<16x1xf32>
    %42 = math.rsqrt %41 : vector<16x1xf32>
    %43 = vector.broadcast %42 : vector<16x1xf32> to vector<16x32xf32>
    %44 = arith.mulf %39, %43 : vector<16x32xf32>
    %c0_17 = arith.constant 0 : index
    %c0_18 = arith.constant 0 : index
    %45 = vector.load %arg6[%c0_17, %c0_18] : memref<1x32xf32, #tpu.memory_space<vmem>>, vector<1x32xf32>
    %46 = vector.broadcast %45 : vector<1x32xf32> to vector<16x32xf32>
    %47 = arith.mulf %44, %46 : vector<16x32xf32>
    %c0_19 = arith.constant 0 : index
    %c0_20 = arith.constant 0 : index
    %48 = vector.load %arg7[%c0_19, %c0_20] : memref<1x32xf32, #tpu.memory_space<vmem>>, vector<1x32xf32>
    %49 = vector.broadcast %48 : vector<1x32xf32> to vector<16x32xf32>
    %50 = arith.addf %47, %49 : vector<16x32xf32>
    %51 = arith.truncf %50 : vector<16x32xf32> to vector<16x32xbf16>
    %c0_21 = arith.constant 0 : index
    %c0_22 = arith.constant 0 : index
    %52 = vector.load %arg8[%c0_21, %c0_22] : memref<32x5xbf16, #tpu.memory_space<vmem>>, vector<32x5xbf16>
    %cst_23 = arith.constant dense<0.000000e+00> : vector<16x5xf32>
    %53 = tpu.matmul %51, %52, %cst_23 {dimension_numbers = #tpu.dot_dimension_numbers<[1], [0], [0], [1], [0, 0, 1, 1], [], []>} : vector<16x32xbf16>, vector<32x5xbf16>, vector<16x5xf32> -> vector<16x5xf32>
    %c0_24 = arith.constant 0 : index
    %c0_25 = arith.constant 0 : index
    %54 = vector.load %arg9[%c0_24, %c0_25] : memref<1x5xf32, #tpu.memory_space<vmem>>, vector<1x5xf32>
    %55 = vector.broadcast %54 : vector<1x5xf32> to vector<16x5xf32>
    %56 = arith.addf %53, %55 : vector<16x5xf32>
    %57 = tpu.concatenate %7, %56 in 1 : vector<16x5xf32>, vector<16x5xf32> -> vector<16x10xf32>
    %c0_26 = arith.constant 0 : index
    %c0_27 = arith.constant 0 : index
    %58 = vector.load %arg10[%c0_26, %c0_27] : memref<16x10xf32, #tpu.memory_space<vmem>>, vector<16x10xf32>
    tpu.vector_store %arg10[%c0_26, %c0_27], %57 {strides = array<i32>} : memref<16x10xf32, #tpu.memory_space<vmem>>, vector<16x10xf32>,
    return
  }
  func.func @transform_0(%arg0: i32) -> (i32, i32) {
    %c0_i32 = arith.constant 0 : i32
    %c0_i32_0 = arith.constant 0 : i32
    return %arg0, %c0_i32 : i32, i32
  }
  func.func @transform_1(%arg0: i32) -> (i32, i32) {
    %c0_i32 = arith.constant 0 : i32
    %c0_i32_0 = arith.constant 0 : i32
    %c0_i32_1 = arith.constant 0 : i32
    return %c0_i32, %c0_i32_0 : i32, i32
  }
  func.func @transform_2(%arg0: i32) -> (i32, i32) {
    %c0_i32 = arith.constant 0 : i32
    %c0_i32_0 = arith.constant 0 : i32
    %c0_i32_1 = arith.constant 0 : i32
    return %c0_i32, %c0_i32_0 : i32, i32
  }
  func.func @transform_3(%arg0: i32) -> (i32, i32) {
    %c0_i32 = arith.constant 0 : i32
    %c0_i32_0 = arith.constant 0 : i32
    %c0_i32_1 = arith.constant 0 : i32
    return %c0_i32, %c0_i32_0 : i32, i32
  }
  func.func @transform_4(%arg0: i32) -> (i32, i32) {
    %c0_i32 = arith.constant 0 : i32
    %c0_i32_0 = arith.constant 0 : i32
    %c0_i32_1 = arith.constant 0 : i32
    return %c0_i32, %c0_i32_0 : i32, i32
  }
  func.func @transform_5(%arg0: i32) -> (i32, i32) {
    %c0_i32 = arith.constant 0 : i32
    %c0_i32_0 = arith.constant 0 : i32
    %c0_i32_1 = arith.constant 0 : i32
    return %c0_i32, %c0_i32_0 : i32, i32
  }
  func.func @transform_6(%arg0: i32) -> (i32, i32) {
    %c0_i32 = arith.constant 0 : i32
    %c0_i32_0 = arith.constant 0 : i32
    %c0_i32_1 = arith.constant 0 : i32
    return %c0_i32, %c0_i32_0 : i32, i32
  }
  func.func @transform_7(%arg0: i32) -> (i32, i32) {
    %c0_i32 = arith.constant 0 : i32
    %c0_i32_0 = arith.constant 0 : i32
    %c0_i32_1 = arith.constant 0 : i32
    return %c0_i32, %c0_i32_0 : i32, i32
  }
  func.func @transform_8(%arg0: i32) -> (i32, i32) {
    %c0_i32 = arith.constant 0 : i32
    %c0_i32_0 = arith.constant 0 : i32
    %c0_i32_1 = arith.constant 0 : i32
    return %c0_i32, %c0_i32_0 : i32, i32
  }
  func.func @transform_9(%arg0: i32) -> (i32, i32) {
    %c0_i32 = arith.constant 0 : i32
    %c0_i32_0 = arith.constant 0 : i32
    return %arg0, %c0_i32 : i32, i32
  }
}

</mosaic_0001>

<llo_original>
// kernel: span_encoder_forward.1
$region0: #{span_encoder_forward.1}
  #allocation0 [shape = 'u32[]', space=smem, size = 0x4, offset = 0x4, fixed_abs, tag = 'smem constant byte address 0x4 - core index']
  #allocation1 [shape = 'u32[144,128]{1,0:T(1,128)}', space=vmem, size = 0x12000, scoped, tag = 'internal scratch']
  %s0 = inlined_call_operand.vmem [shape: f32[16,32], index: 0, kind: input, shape index: {}]
  %s1 = inlined_call_operand.vmem [shape: bf16[32,37], index: 1, kind: input, shape index: {}]
  %s2 = inlined_call_operand.vmem [shape: f32[1,5], index: 2, kind: input, shape index: {}]
  %s3 = inlined_call_operand.vmem [shape: bf16[5,32], index: 3, kind: input, shape index: {}]
  %s4 = inlined_call_operand.vmem [shape: f32[1,32], index: 4, kind: input, shape index: {}]
  %s5 = inlined_call_operand.vmem [shape: f32[1,32], index: 5, kind: input, shape index: {}]
  %s6 = inlined_call_operand.vmem [shape: f32[1,32], index: 6, kind: input, shape index: {}]
  %s7 = inlined_call_operand.vmem [shape: bf16[32,5], index: 7, kind: input, shape index: {}]
  %s8 = inlined_call_operand.vmem [shape: f32[1,5], index: 8, kind: input, shape index: {}]
  %s9 = inlined_call_operand.vmem [shape: f32[16,10], index: 9, kind: output, shape index: {}]
  %s10 = sld [smem:[#allocation0]]
  $region46: #{span_encoder_forward.1} parent=0
    _
  %s12 = ssub.s32 1, %s10
  %s13 = scalar_select 0, %s12, %s10
  // Predicated region
  $region2: #{span_encoder_forward.1} parent=0 // pred_check
    _
  $region3: #{span_encoder_forward.1} parent=0 // pred_check_branch
    %15 = sbr.rel (0) target = $region5
  $region4: #{span_encoder_forward.1} parent=0 // pred_region
    _
  $region5: #{span_encoder_forward.1} parent=0 // pred_fallthru
    _
  // Predicated region
  $region6: #{span_encoder_forward.1} parent=0 // pred_check
    _
  $region7: #{span_encoder_forward.1} parent=0 // pred_check_branch
    %17 = sbr.rel (0) target = $region9
  $region8: #{span_encoder_forward.1} parent=0 // pred_region
    _
  $region9: #{span_encoder_forward.1} parent=0 // pred_fallthru
    _
  // Predicated region
  $region10: #{span_encoder_forward.1} parent=0 // pred_check
    _
  $region11: #{span_encoder_forward.1} parent=0 // pred_check_branch
    %19 = sbr.rel (0) target = $region13
  $region12: #{span_encoder_forward.1} parent=0 // pred_region
    _
  $region13: #{span_encoder_forward.1} parent=0 // pred_fallthru
    _
  // Predicated region
  $region14: #{span_encoder_forward.1} parent=0 // pred_check
    _
  $region15: #{span_encoder_forward.1} parent=0 // pred_check_branch
    %21 = sbr.rel (0) target = $region17
  $region16: #{span_encoder_forward.1} parent=0 // pred_region
    _
  $region17: #{span_encoder_forward.1} parent=0 // pred_fallthru
    _
  // Predicated region
  $region18: #{span_encoder_forward.1} parent=0 // pred_check
    _
  $region19: #{span_encoder_forward.1} parent=0 // pred_check_branch
    %23 = sbr.rel (0) target = $region21
  $region20: #{span_encoder_forward.1} parent=0 // pred_region
    _
  $region21: #{span_encoder_forward.1} parent=0 // pred_fallthru
    _
  // Predicated region
  $region22: #{span_encoder_forward.1} parent=0 // pred_check
    _
  $region23: #{span_encoder_forward.1} parent=0 // pred_check_branch
    %25 = sbr.rel (0) target = $region25
  $region24: #{span_encoder_forward.1} parent=0 // pred_region
    _
  $region25: #{span_encoder_forward.1} parent=0 // pred_fallthru
    _
  // Predicated region
  $region26: #{span_encoder_forward.1} parent=0 // pred_check
    _
  $region27: #{span_encoder_forward.1} parent=0 // pred_check_branch
    %27 = sbr.rel (0) target = $region29
  $region28: #{span_encoder_forward.1} parent=0 // pred_region
    _
  $region29: #{span_encoder_forward.1} parent=0 // pred_fallthru
    _
  // Predicated region
  $region30: #{span_encoder_forward.1} parent=0 // pred_check
    _
  $region31: #{span_encoder_forward.1} parent=0 // pred_check_branch
    %29 = sbr.rel (0) target = $region33
  $region32: #{span_encoder_forward.1} parent=0 // pred_region
    _
  $region33: #{span_encoder_forward.1} parent=0 // pred_fallthru
    _
  // Predicated region
  $region34: #{span_encoder_forward.1} parent=0 // pred_check
    _
  $region35: #{span_encoder_forward.1} parent=0 // pred_check_branch
    %31 = sbr.rel (0) target = $region37
  $region36: #{span_encoder_forward.1} parent=0 // pred_region
    _
  $region37: #{span_encoder_forward.1} parent=0 // pred_fallthru
    _
  %v33 = vld [vmem:[%s0] sm:$0xff]
  %v34 = vld [vmem:[%s0 + $0x8] sm:$0xff]
  %v35 = vpack.c.bf16 %v34, %v33
  %v36 = vld [vmem:[%s1] sm:$0xf]
  %v37 = vld [vmem:[%s1 + $0x4] sm:$0xf]
  %v38 = vld [vmem:[%s1 + $0x8] sm:$0xf]
  %v39 = vld [vmem:[%s1 + $0xc] sm:$0xf]
  %v44 = vunpack.c.l.b16 %v36
  %v45 = vunpack.c.l.b16 %v37
  %v46 = vunpack.c.l.b16 %v38
  %v47 = vunpack.c.l.b16 %v39
  %v48 = vpack.c.b16 %v45, %v44
  %v49 = vpack.c.b16 %v47, %v46
  %vm52 = vcmask 261120
  %v54 = vsel %vm52, %v35, 0
  %56 = vmatprep.subr.bf16.mxu0 0
  %57 = vmatpush1.bf16.msra.mxu0 %v48
  %58 = vmatprep.subr.bf16.mxu0 0
  %59 = vmatpush1.bf16.msra.mxu0 %v49
  %60 = vmatprep.subr.bf16.mxu0 0
  %61 = vmatpush1.bf16.msra.mxu0 0
  %62 = vmatprep.subr.bf16.mxu0 0
  %63 = vmatpush1.bf16.msra.mxu0 0
  %64 = vmatprep.subr.bf16.mxu0 0
  %65 = vmatpush1.bf16.msra.mxu0 0
  %66 = vmatprep.subr.bf16.mxu0 0
  %67 = vmatpush1.bf16.msra.mxu0 0
  %68 = vmatprep.subr.bf16.mxu0 0
  %69 = vmatpush1.bf16.msra.mxu0 0
  %70 = vmatprep.subr.bf16.mxu0 0
  %71 = vmatpush1.bf16.msra.mxu0 0
  %72 = vmatprep.subr.bf16.mxu0 0
  %73 = vmatpush1.bf16.msra.mxu0 0
  %74 = vmatprep.subr.bf16.mxu0 0
  %75 = vmatpush1.bf16.msra.mxu0 0
  %76 = vmatprep.subr.bf16.mxu0 0
  %77 = vmatpush1.bf16.msra.mxu0 0
  %78 = vmatprep.subr.bf16.mxu0 0
  %79 = vmatpush1.bf16.msra.mxu0 0
  %80 = vmatprep.subr.bf16.mxu0 0
  %81 = vmatpush1.bf16.msra.mxu0 0
  %82 = vmatprep.subr.bf16.mxu0 0
  %83 = vmatpush1.bf16.msra.mxu0 0
  %84 = vmatprep.subr.bf16.mxu0 0
  %85 = vmatpush1.bf16.msra.mxu0 0
  %86 = vmatprep.subr.bf16.mxu0 0
  %87 = vmatpush1.bf16.msra.mxu0 0
  %88 = vmatprep.mubr.bf16.mxu0 0
  %89 = vmatmul.mubr.bf16.gmra.mrb[0].mxu0 %v54
  %v90 = vpop.f32.mrb[0].mxu0
  %v91 = vadd.f32 0.0, %v90
  %v92 = vpop.f32.mrb[0].mxu0
  %v93 = vpop.f32.mrb[0].mxu0
  %v94 = vadd.f32 0.0, %v93
  %v95 = vpop.f32.mrb[0].mxu0
  %96 = vdwg.mxu0
  %v97 = vld [vmem:[%s2] sm:$0x1]
  %v99 = vlaneseq
  %v100 = vshrl.u32 %v99, 7
  %v101 = vsub.s32 0, %v100
  %v102 = vrot.slane %v97, %v101
  %103 = vrot.lane.b32.xlu0 %v102, 32
  %v104 = vpop.permute.xlu0 %103
  %v106 = vadd.f32 %v91, %v104
  %v107 = vadd.f32 %v94, %v104
  %vm108 = vcmask 302336
  %v109 = vsel %vm108, %v106, -inf
  %110 = vmax.xlane.f32.xlu0 %v109
  %v111 = vpop.xlane.xlu0 %110
  %v112 = vsel %vm108, %v107, -inf
  %113 = vmax.xlane.f32.xlu0 %v112
  %v114 = vpop.xlane.xlu0 %113
  %v115 = vsub.f32 %v106, %v111
  %v116 = vsub.f32 %v107, %v114
  %v117 = vmul.f32 %v115, 1.442695
  %v118 = vpow.pop %v117
  %v119 = vmul.f32 %v116, 1.442695
  %v120 = vpow.pop %v119
  %123 = vrot.lane.b32.xlu0 %v118, 96
  %v124 = vpop.permute.xlu0 %123
  %125 = vrot.lane.b32.xlu0 %v120, 96
  %v126 = vpop.permute.xlu0 %125
  %vm129 = vcmask 39936
  %v130 = vsel %vm129, %v124, 0.0
  %131 = vadd.xlane.f32.xlu0 %v130
  %v132 = vpop.xlane.xlu0 %131
  %v133 = vsel %vm129, %v126, 0.0
  %134 = vadd.xlane.f32.xlu0 %v133
  %v135 = vpop.xlane.xlu0 %134
  %v136 = vrcp.pop %v132
  %v137 = vrcp.pop %v135
  %v138 = vmul.f32 %v118, %v136
  %v139 = vmul.f32 %v120, %v137
  %v140 = vpack.c.bf16 %v139, %v138
  %v141 = vld [vmem:[%s3] sm:$0x7]
  %143 = vrot.lane.b32.xlu0 %v140, 96
  %v144 = vpop.permute.xlu0 %143
  %v146 = vsel %vm129, %v144, 0
  %vm148 = vcmask 1041408
  %vm149 = vcmask 1042432
  %v150 = vsel %vm148, 4294967295, 65535
  %v151 = vsel %vm149, %v150, 0
  %v153 = vand.u32 %v141, %v151
  %155 = vmatprep.subr.bf16.mxu0 0
  %156 = vmatpush1.bf16.msra.mxu0 %v153
  %157 = vmatprep.subr.bf16.mxu0 0
  %158 = vmatpush1.bf16.msra.mxu0 0
  %159 = vmatprep.subr.bf16.mxu0 0
  %160 = vmatpush1.bf16.msra.mxu0 0
  %161 = vmatprep.subr.bf16.mxu0 0
  %162 = vmatpush1.bf16.msra.mxu0 0
  %163 = vmatprep.subr.bf16.mxu0 0
  %164 = vmatpush1.bf16.msra.mxu0 0
  %165 = vmatprep.subr.bf16.mxu0 0
  %166 = vmatpush1.bf16.msra.mxu0 0
  %167 = vmatprep.subr.bf16.mxu0 0
  %168 = vmatpush1.bf16.msra.mxu0 0
  %169 = vmatprep.subr.bf16.mxu0 0
  %170 = vmatpush1.bf16.msra.mxu0 0
  %171 = vmatprep.subr.bf16.mxu0 0
  %172 = vmatpush1.bf16.msra.mxu0 0
  %173 = vmatprep.subr.bf16.mxu0 0
  %174 = vmatpush1.bf16.msra.mxu0 0
  %175 = vmatprep.subr.bf16.mxu0 0
  %176 = vmatpush1.bf16.msra.mxu0 0
  %177 = vmatprep.subr.bf16.mxu0 0
  %178 = vmatpush1.bf16.msra.mxu0 0
  %179 = vmatprep.subr.bf16.mxu0 0
  %180 = vmatpush1.bf16.msra.mxu0 0
  %181 = vmatprep.subr.bf16.mxu0 0
  %182 = vmatpush1.bf16.msra.mxu0 0
  %183 = vmatprep.subr.bf16.mxu0 0
  %184 = vmatpush1.bf16.msra.mxu0 0
  %185 = vmatprep.subr.bf16.mxu0 0
  %186 = vmatpush1.bf16.msra.mxu0 0
  %187 = vmatprep.mubr.bf16.mxu0 0
  %188 = vmatmul.mubr.bf16.gmra.mrb[0].mxu0 %v146
  %v189 = vpop.f32.mrb[0].mxu0
  %v190 = vadd.f32 0.0, %v189
  %v191 = vpop.f32.mrb[0].mxu0
  %v192 = vpop.f32.mrb[0].mxu0
  %v193 = vadd.f32 0.0, %v192
  %v194 = vpop.f32.mrb[0].mxu0
  %195 = vdwg.mxu0
  %v196 = vadd.f32 %v91, %v190
  %v197 = vadd.f32 %v94, %v193
  %v198 = vld [vmem:[%s4] sm:$0x1]
  %v200 = vlaneseq
  %v201 = vshrl.u32 %v200, 7
  %v202 = vsub.s32 0, %v201
  %v203 = vrot.slane %v198, %v202
  %v205 = vadd.f32 %v196, %v203
  %v206 = vadd.f32 %v197, %v203
  %v207 = vtanh.pop %v205
  %v208 = vtanh.pop %v206
  %v209 = vsel %vm52, %v207, 0.0
  %210 = vadd.xlane.f32.xlu0 %v209
  %v211 = vpop.xlane.xlu0 %210
  %v212 = vsel %vm52, %v208, 0.0
  %213 = vadd.xlane.f32.xlu0 %v212
  %v214 = vpop.xlane.xlu0 %213
  %v215 = vrcp.pop 32.0
  %v216 = vmul.f32 %v211, %v215
  %v217 = vmul.f32 %v214, %v215
  %v218 = vsub.f32 %v207, %v216
  %v219 = vsub.f32 %v208, %v217
  %v220 = vmul.f32 %v218, %v218
  %v221 = vmul.f32 %v219, %v219
  %v222 = vsel %vm52, %v220, 0.0
  %223 = vadd.xlane.f32.xlu0 %v222
  %v224 = vpop.xlane.xlu0 %223
  %v225 = vsel %vm52, %v221, 0.0
  %226 = vadd.xlane.f32.xlu0 %v225
  %v227 = vpop.xlane.xlu0 %226
  %v228 = vmul.f32 %v224, %v215
  %v229 = vmul.f32 %v227, %v215
  %v230 = vadd.f32 %v228, 1e-05
  %v231 = vadd.f32 %v229, 1e-05
  %v232 = vrsqrt.pop %v230
  %v233 = vrsqrt.pop %v231
  %v234 = vmul.f32 %v218, %v232
  %v235 = vmul.f32 %v219, %v233
  %v236 = vld [vmem:[%s5] sm:$0x1]
  %v238 = vlaneseq
  %v239 = vshrl.u32 %v238, 7
  %v240 = vsub.s32 0, %v239
  %v241 = vrot.slane %v236, %v240
  %v243 = vmul.f32 %v234, %v241
  %v244 = vmul.f32 %v235, %v241
  %v245 = vld [vmem:[%s6] sm:$0x1]
  %v247 = vlaneseq
  %v248 = vshrl.u32 %v247, 7
  %v249 = vsub.s32 0, %v248
  %v250 = vrot.slane %v245, %v249
  %v252 = vadd.f32 %v243, %v250
  %v253 = vadd.f32 %v244, %v250
  %v254 = vpack.c.bf16 %v253, %v252
  %v255 = vld [vmem:[%s7] sm:$0xf]
  %v256 = vld [vmem:[%s7 + $0x4] sm:$0xf]
  %v257 = vld [vmem:[%s7 + $0x8] sm:$0xf]
  %v258 = vld [vmem:[%s7 + $0xc] sm:$0xf]
  %v259 = vld [vmem:[%s8] sm:$0x1]
  %v261 = vlaneseq
  %v262 = vshrl.u32 %v261, 7
  %v263 = vsub.s32 0, %v262
  %v264 = vrot.slane %v259, %v263
  %v270 = vunpack.c.l.b16 %v255
  %v271 = vunpack.c.l.b16 %v256
  %v272 = vunpack.c.l.b16 %v257
  %v273 = vunpack.c.l.b16 %v258
  %v274 = vpack.c.b16 %v271, %v270
  %v275 = vpack.c.b16 %v273, %v272
  %v279 = vsel %vm52, %v254, 0
  %281 = vmatprep.subr.bf16.mxu0 0
  %282 = vmatpush1.bf16.msra.mxu0 %v274
  %283 = vmatprep.subr.bf16.mxu0 0
  %284 = vmatpush1.bf16.msra.mxu0 %v275
  %285 = vmatprep.subr.bf16.mxu0 0
  %286 = vmatpush1.bf16.msra.mxu0 0
  %287 = vmatprep.subr.bf16.mxu0 0
  %288 = vmatpush1.bf16.msra.mxu0 0
  %289 = vmatprep.subr.bf16.mxu0 0
  %290 = vmatpush1.bf16.msra.mxu0 0
  %291 = vmatprep.subr.bf16.mxu0 0
  %292 = vmatpush1.bf16.msra.mxu0 0
  %293 = vmatprep.subr.bf16.mxu0 0
  %294 = vmatpush1.bf16.msra.mxu0 0
  %295 = vmatprep.subr.bf16.mxu0 0
  %296 = vmatpush1.bf16.msra.mxu0 0
  %297 = vmatprep.subr.bf16.mxu0 0
  %298 = vmatpush1.bf16.msra.mxu0 0
  %299 = vmatprep.subr.bf16.mxu0 0
  %300 = vmatpush1.bf16.msra.mxu0 0
  %301 = vmatprep.subr.bf16.mxu0 0
  %302 = vmatpush1.bf16.msra.mxu0 0
  %303 = vmatprep.subr.bf16.mxu0 0
  %304 = vmatpush1.bf16.msra.mxu0 0
  %305 = vmatprep.subr.bf16.mxu0 0
  %306 = vmatpush1.bf16.msra.mxu0 0
  %307 = vmatprep.subr.bf16.mxu0 0
  %308 = vmatpush1.bf16.msra.mxu0 0
  %309 = vmatprep.subr.bf16.mxu0 0
  %310 = vmatpush1.bf16.msra.mxu0 0
  %311 = vmatprep.subr.bf16.mxu0 0
  %312 = vmatpush1.bf16.msra.mxu0 0
  %313 = vmatprep.mubr.bf16.mxu0 0
  %314 = vmatmul.mubr.bf16.gmra.mrb[0].mxu0 %v279
  %v315 = vpop.f32.mrb[0].mxu0
  %v316 = vadd.f32 %v264, %v315
  %v317 = vpop.f32.mrb[0].mxu0
  %v318 = vpop.f32.mrb[0].mxu0
  %v319 = vadd.f32 %v264, %v318
  %v320 = vpop.f32.mrb[0].mxu0
  %321 = vdwg.mxu0
  %324 = vrot.lane.b32.xlu0 %v106, 96
  %v325 = vpop.permute.xlu0 %324
  %326 = vrot.lane.b32.xlu0 %v107, 96
  %v327 = vpop.permute.xlu0 %326
  %332 = vrot.lane.b32.xlu0 %v316, 5
  %v333 = vpop.permute.xlu0 %332
  %334 = vrot.lane.b32.xlu0 %v319, 5
  %v335 = vpop.permute.xlu0 %334
  %v338 = vsel %vm129, %v325, %v333
  %v339 = vsel %vm129, %v327, %v335
  %vm340 = vcmask 80896
  %341 = vst.msk [vmem:[%s9] sm:$0xff] %vm340, %v338
  %342 = vst.msk [vmem:[%s9 + $0x8] sm:$0xff] %vm340, %v339
  // Predicated region
  $region38: #{span_encoder_forward.1} parent=0 // pred_check
    _
  $region39: #{span_encoder_forward.1} parent=0 // pred_check_branch
    %344 = sbr.rel (0) target = $region41
  $region40: #{span_encoder_forward.1} parent=0 // pred_region
    _
  $region41: #{span_encoder_forward.1} parent=0 // pred_fallthru
    _
  // Predicated region
  $region42: #{span_encoder_forward.1} parent=0 // pred_check
    _
  $region43: #{span_encoder_forward.1} parent=0 // pred_check_branch
    %346 = sbr.rel (0) target = $region45
  $region44: #{span_encoder_forward.1} parent=0 // pred_region
    _
  $region45: #{span_encoder_forward.1} parent=0 // pred_fallthru
    _

</llo_original>
